<compile_context>
chip_gen: v7x
topology: tpu7x:2x2x1
jax: 0.10.0
libtpu: 0.0.40
codegen_flags: <defaults>
</compile_context>

<pallas_src>
import jax
import jax.numpy as jnp
from jax.experimental import pallas as pl
from jax.experimental.pallas import tpu as pltpu

_MIB = 1024 * 1024


def _copy_kernel(x_ref, o_ref):
    # Pure lane-dense pass-through: one vectorized load + one unmasked,
    # lane-dense store per tile.  Memory-bound; nothing else to do.
    o_ref[...] = x_ref[...]


def _vmem_capacity_bytes() -> int:
    """Physical VMEM per TensorCore; conservative fallback if query fails."""
    try:
        return int(pltpu.get_tpu_info().vmem_capacity_bytes)
    except Exception:
        return 64 * _MIB  # v7x per-TC VMEM (smallest of v5e/v6e/v7x)


def _sublane_pack(itemsize: int) -> int:
    """Rows per vreg for this dtype: f32->8, bf16->16, int8/fp8->32."""
    return max(32 // max(itemsize, 1), 8)


def _choose_flat_shape(bn: int, channel: int, total: int):
    """Pick a lane-dense 2D view (rows, lane) of the contiguous buffer.

    lane is the largest multiple of 128 (<= 2048) dividing the element count;
    if none exists, fall back to the natural (bn, channel) slab (full-extent
    last dim is always a legal BlockSpec).
    """
    for lane in range(2048, 0, -128):
        if total % lane == 0:
            return total // lane, lane
    return bn, channel


def _pick_row_tile(rows: int, lane: int, itemsize: int,
                   tile_bytes: int, pack: int) -> int:
    """Largest pack-aligned row tile fitting the per-block byte budget,
    capped so that large slabs produce >= 2 grid steps (v7x megacore)."""
    max_rows = max(tile_bytes // (lane * itemsize), pack)
    max_rows = max((max_rows // pack) * pack, pack)
    if rows >= 2 * pack:
        half = -(-((rows + 1) // 2) // pack) * pack  # ceil(rows/2) to pack
        max_rows = min(max_rows, half)
    if rows <= max_rows:
        return rows  # full extent is always a legal block
    return max_rows


def linear_view_forward(x: jax.Array, channel: int, *,
                        materialize: bool = False) -> jax.Array:
    """Pallas/JAX implementation of LinearView.forward.

    materialize=False (default): metadata-only reshape, exactly like torch
    .view (recommended — no kernel launch, no HBM traffic).
    materialize=True: lane-dense tiled Pallas copy producing a fresh buffer.
    """
    if x.ndim != 3:
        return x
    bn, charn, cn = x.shape
    if charn != 1:
        return x
    # torch .view(BN, channel) requires the element count to match.
    assert charn * cn == channel, (bn, charn, cn, channel)

    if not materialize:
        # TODO(synk): torch .view aliases storage; JAX has no aliasing, but
        # jnp.reshape on a contiguous array is an XLA bitcast (zero cost).
        return jnp.reshape(x, (bn, channel))

    itemsize = jnp.dtype(x.dtype).itemsize
    total = bn * channel
    rows, lane = _choose_flat_shape(bn, channel, total)

    # Generation-aware VMEM budget.
    vmem_cap = _vmem_capacity_bytes()
    vmem_limit = max((vmem_cap * 3) // 4, 32 * _MIB)      # 96 MiB @128, 48 @64
    pipeline_budget = min(vmem_limit // 2, 40 * _MIB)     # in+out, dbl-buffered
    tile_bytes = max(pipeline_budget // 4, 2 * _MIB)      # per block

    pack = _sublane_pack(itemsize)
    tile_rows = _pick_row_tile(rows, lane, itemsize, tile_bytes, pack)
    grid = (pl.cdiv(rows, tile_rows),)

    # Metadata-only reshape to the lane-dense slab before the kernel.
    x_flat = jnp.reshape(x, (rows, lane))

    cost = pl.CostEstimate(
        flops=0,
        transcendentals=0,
        bytes_accessed=2 * total * itemsize,
    )

    out_flat = pl.pallas_call(
        _copy_kernel,
        out_shape=jax.ShapeDtypeStruct((rows, lane), x.dtype),
        grid_spec=pltpu.PrefetchScalarGridSpec(
            num_scalar_prefetch=0,
            grid=grid,
            in_specs=[pl.BlockSpec((tile_rows, lane), lambda i: (i, 0))],
            out_specs=pl.BlockSpec((tile_rows, lane), lambda i: (i, 0)),
        ),
        compiler_params=pltpu.CompilerParams(
            dimension_semantics=("parallel",),
            vmem_limit_bytes=vmem_limit,
        ),
        cost_estimate=cost,
    )(x_flat)

    # Metadata-only reshape back to the module's output shape.
    return jnp.reshape(out_flat, (bn, channel))


if __name__ == "__main__":
    channel = 32
    BN = 8

    key = jax.random.PRNGKey(0)
    k1, k2, k3, k4 = jax.random.split(key, 4)

    # Main path: 3D input with CHARN == 1 -> (BN, channel).
    x = jax.random.normal(k1, (BN, 1, channel), jnp.float32)
    ref = jnp.reshape(x, (BN, channel))

    # Default (recommended) path: metadata-only reshape, no kernel.
    out_view = jax.block_until_ready(linear_view_forward(x, channel))
    assert out_view.shape == (BN, channel)
    assert out_view.dtype == x.dtype
    assert jnp.array_equal(out_view, ref)

    # Pallas path: explicit lane-dense materialized copy.
    out_pallas = jax.block_until_ready(
        linear_view_forward(x, channel, materialize=True))
    assert out_pallas.shape == (BN, channel)
    assert out_pallas.dtype == x.dtype
    assert jnp.array_equal(out_pallas, ref)

    # bf16 exercise of the sublane-packing-aware Pallas path.
    xb = (jax.random.normal(k2, (BN, 1, channel), jnp.float32)
          .astype(jnp.bfloat16))
    outb = jax.block_until_ready(
        linear_view_forward(xb, channel, materialize=True))
    assert outb.shape == (BN, channel)
    assert jnp.array_equal(outb, jnp.reshape(xb, (BN, channel)))

    # Pass-through path 1: 3D input with CHARN != 1 -> unchanged.
    xm = jax.random.normal(k3, (BN, 3, channel), jnp.float32)
    outm = linear_view_forward(xm, channel)
    assert outm.shape == xm.shape
    assert jnp.array_equal(outm, xm)

    # Pass-through path 2: 2D input -> unchanged.
    x2 = jax.random.normal(k4, (BN, channel), jnp.float32)
    out2 = linear_view_forward(x2, channel)
    assert out2.shape == x2.shape
    assert jnp.array_equal(out2, x2)

    print("KERNEL_OK")
</pallas_src>

<mosaic_0001>
module attributes {stable_mosaic.version = 11 : i64} {
  func.func @_copy_kernel(%arg0: i32, %arg1: memref<1x256xf32, #tpu.memory_space<vmem>>, %arg2: memref<1x256xf32, #tpu.memory_space<vmem>>) attributes {dimension_semantics = [#tpu.dimension_semantics<parallel>], iteration_bounds = array<i64: 1>, scalar_prefetch = 0 : i64, scratch_operands = 0 : i64, tpu.core_type = #tpu.core_type<tc>, window_params = [{transform_indices = @transform_0, window_bounds = array<i64: 1, 256>}, {transform_indices = @transform_1, window_bounds = array<i64: 1, 256>}]} {
    %c0 = arith.constant 0 : index
    %c0_0 = arith.constant 0 : index
    %0 = vector.load %arg1[%c0, %c0_0] : memref<1x256xf32, #tpu.memory_space<vmem>>, vector<1x256xf32>
    %c0_1 = arith.constant 0 : index
    %c0_2 = arith.constant 0 : index
    %1 = vector.load %arg2[%c0_1, %c0_2] : memref<1x256xf32, #tpu.memory_space<vmem>>, vector<1x256xf32>
    tpu.vector_store %arg2[%c0_1, %c0_2], %0 {strides = array<i32>} : memref<1x256xf32, #tpu.memory_space<vmem>>, vector<1x256xf32>,
    return
  }
  func.func @transform_0(%arg0: i32) -> (i32, i32) {
    %c0_i32 = arith.constant 0 : i32
    %c0_i32_0 = arith.constant 0 : i32
    return %arg0, %c0_i32 : i32, i32
  }
  func.func @transform_1(%arg0: i32) -> (i32, i32) {
    %c0_i32 = arith.constant 0 : i32
    %c0_i32_0 = arith.constant 0 : i32
    return %arg0, %c0_i32 : i32, i32
  }
}

</mosaic_0001>

<llo_original>
// kernel: tpu_custom_call.1
$region0: #{tpu_custom_call.1}
  #allocation0 [shape = 'u32[]', space=smem, size = 0x4, offset = 0x4, fixed_abs, tag = 'smem constant byte address 0x4 - core index']
  #allocation1 [shape = 'u32[144,128]{1,0:T(1,128)}', space=vmem, size = 0x12000, scoped, tag = 'internal scratch']
  %s0 = inlined_call_operand.hbm [shape: f32[1,256], index: 0, kind: input, shape index: {}]
  %s1 = inlined_call_operand.hbm [shape: f32[1,256], index: 1, kind: output, shape index: {}]
  %s2 = sld [smem:[#allocation0]]
  $region18: #{tpu_custom_call.1} parent=0
    _
  %s4 = ssub.s32 1, %s2
  %s5 = scalar_select 0, %s4, %s2
  $region1: #{tpu_custom_call.1} parent=0
    #allocation2 [shape = 'u8[1024]{0}', space=vmem, size = 0x400, scoped, tag = 'input window, operand 0, single buffered']
    #allocation3 [shape = 's32[1]{0}', space=sflag, size = 0x4, scoped, tag = 'scoped memory for tpu_custom_call.1']
    #allocation4 [shape = 's32[1]{0}', space=sflag, size = 0x4, scoped, tag = 'scoped memory for tpu_custom_call.1']
    #allocation5 [shape = 'u8[1024]{0}', space=vmem, size = 0x400, scoped, tag = 'output window, operand 0, single buffered']
    %6 = vsyncpa [#allocation3], 0
    %7 = vsyncpa [#allocation4], 0
    // Predicated region
    $region2: #{tpu_custom_call.1} parent=1 // pred_check
      _
    $region3: #{tpu_custom_call.1} parent=1 // pred_check_branch
      %9 = sbr.rel (0) target = $region5
    $region4: #{tpu_custom_call.1} parent=1 // pred_region
      %s11 = ssub.s32 32, 32
      %12 = vsyncadd [#allocation3], %s11
      %s14 = sshll.u32 [#allocation2], 4
      %s15 = int_to_ptr.vmem [resolvable:$true] %s14
      %17 = dma.hbm_to_vmem [thread:$0]  %s0, 32, %s15, [#allocation3]
    $region5: #{tpu_custom_call.1} parent=1 // pred_fallthru
      _
    // Predicated region
    $region6: #{tpu_custom_call.1} parent=1 // pred_check
      _
    $region7: #{tpu_custom_call.1} parent=1 // pred_check_branch
      %19 = sbr.rel (0) target = $region9
    $region8: #{tpu_custom_call.1} parent=1 // pred_region
      %20 = dma.done [#allocation3], 32
    $region9: #{tpu_custom_call.1} parent=1 // pred_fallthru
      _
    %v21 = vld [vmem:[#allocation2] sm:$0x3]
    %v22 = vlaneseq
    %vm23 = vcmp.ge.s32.totalorder %v22, 0
    %vm24 = vcmp.lt.s32.totalorder %v22, 256
    %vm25 = vmand %vm23, %vm24
    %26 = vst.msk [vmem:[#allocation5] sm:$0x3] %vm25, %v21
    // Predicated region
    $region10: #{tpu_custom_call.1} parent=1 // pred_check
      _
    $region11: #{tpu_custom_call.1} parent=1 // pred_check_branch
      %28 = sbr.rel (0) target = $region13
    $region12: #{tpu_custom_call.1} parent=1 // pred_region
      %s30 = ssub.s32 32, 32
      %31 = vsyncadd [#allocation4], %s30
      %s33 = sshll.u32 [#allocation5], 4
      %s34 = int_to_ptr.vmem [resolvable:$true] %s33
      %36 = dma.vmem_to_hbm [thread:$0]  %s34, 32, %s1, [#allocation4]
    $region13: #{tpu_custom_call.1} parent=1 // pred_fallthru
      _
    // Predicated region
    $region14: #{tpu_custom_call.1} parent=1 // pred_check
      _
    $region15: #{tpu_custom_call.1} parent=1 // pred_check_branch
      %38 = sbr.rel (0) target = $region17
    $region16: #{tpu_custom_call.1} parent=1 // pred_region
      %39 = dma.done [#allocation4], 32
    $region17: #{tpu_custom_call.1} parent=1 // pred_fallthru
      _
    %40 = vsyncpa [#allocation3], 1
    %41 = vsyncpa [#allocation4], 1

</llo_original>
